<compile_context>
chip_gen: v7x
topology: tpu7x:2x2x1
jax: 0.10.0
libtpu: 0.0.40
codegen_flags: <defaults>
</compile_context>

<pallas_src>
from functools import partial

import jax
import jax.numpy as jnp
from jax.experimental import pallas as pl
from jax.experimental.pallas import tpu as pltpu


_LANES = 128                 # TPU lane width
_ROW_FLOATS = 2 * _LANES     # 256 interleaved f32 per row == 128 complex elements
_MAX_BLOCK_ROWS = 2048       # (2048, 256) f32 block = 2 MiB in, 1 MiB out
_MIN_PALLAS_ELEMS = 1 << 18  # below this, XLA's fused abs beats a kernel launch
_SAT = 3.0e38                # finite cap: keeps inf/nan out of the MXU (inf*0 -> nan)


def _mod_kernel(x_ref, sel_ref, o_ref):
    """x_ref: (tr,256) f32 interleaved re,im; sel_ref: (256,128) bf16; o_ref: (tr,128) f32."""
    x = x_ref[...]
    sq = x * x
    # Saturate non-finite / overflowed squares: inf * 0 in the MXU pair-sum
    # below would poison a whole row, and the ragged last block's OOB rows may
    # contain arbitrary VMEM garbage.  NaN fails `<=` so it is replaced too.
    # (Do NOT replace with jnp.minimum: that propagates NaN into the MXU.)
    sq = jnp.where(sq <= _SAT, sq, _SAT)

    # 2-term bf16 decomposition: hi + mid == sq to ~2^-18 relative, so two
    # bf16 MXU passes reproduce the f32 pair-sum well inside 5e-5 abs error.
    hi = sq.astype(jnp.bfloat16)
    mid = (sq - hi.astype(jnp.float32)).astype(jnp.bfloat16)

    # sel[k,c] = 1 iff k//2 == c  =>  (sq @ sel)[r,c] = sq[r,2c] + sq[r,2c+1]:
    # the MXU performs the even/odd deinterleave + pair-add, so no lane
    # shuffles hit the VPU/XLU path and the kernel stays memory-bound.
    # (v5e option if vmatmul ever saturates: concat [hi|mid] along K against a
    #  stacked (512,128) sel for a single MXU pass.)
    sel = sel_ref[...]
    ss = jnp.dot(hi, sel, preferred_element_type=jnp.float32)
    ss = ss + jnp.dot(mid, sel, preferred_element_type=jnp.float32)
    o_ref[...] = jnp.sqrt(ss)


def _round_up(x: int, m: int) -> int:
    return (x + m - 1) // m * m


def _interleaved_f32(z: jax.Array) -> jax.Array:
    """Flat float32 view [re0, im0, re1, im1, ...] of a complex64 array."""
    try:
        # Zero-copy reinterpret when supported: complex64 -> (..., 2) float32.
        xf = jax.lax.bitcast_convert_type(z, jnp.float32)
    except Exception:
        # Fallback: one fused XLA interleave pass (same memory layout).
        xf = jnp.stack([jnp.real(z), jnp.imag(z)], axis=-1)
    return xf.reshape(-1)


def _selection_matrix() -> jax.Array:
    """(256,128) bf16 matrix with sel[k,c] = 1 iff k//2 == c (pair-sum compaction)."""
    k = jnp.arange(_ROW_FLOATS, dtype=jnp.int32)[:, None]
    c = jnp.arange(_LANES, dtype=jnp.int32)[None, :]
    return ((k // 2) == c).astype(jnp.bfloat16)


def _mod_2d(x2d: jax.Array, rows: int) -> jax.Array:
    """(rows, 256) interleaved f32 -> (rows, 128) f32 magnitudes via Pallas."""
    sel = _selection_matrix()
    # Largest block allowed, but always >= 2 grid steps so v7x can shard the
    # parallel axis across both TensorCores.  tr is a multiple of 8; the last
    # (ragged) block is handled by masked reads / dropped OOB stores.
    tr = min(_MAX_BLOCK_ROWS, max(8, _round_up(pl.cdiv(rows, 2), 8)))
    grid = (pl.cdiv(rows, tr),)
    cost = pl.CostEstimate(
        flops=2 * 2 * rows * _ROW_FLOATS * _LANES,      # two bf16 matmul passes
        transcendentals=rows * _LANES,                   # sqrt per output element
        bytes_accessed=rows * _ROW_FLOATS * 4 + rows * _LANES * 4 + sel.size * 2,
    )
    return pl.pallas_call(
        _mod_kernel,
        out_shape=jax.ShapeDtypeStruct((rows, _LANES), jnp.float32),
        grid=grid,
        in_specs=[
            pl.BlockSpec((tr, _ROW_FLOATS), lambda i: (i, 0)),
            # Constant index_map: fetched once, stays resident in VMEM (64 KiB).
            pl.BlockSpec((_ROW_FLOATS, _LANES), lambda i: (0, 0)),
        ],
        out_specs=pl.BlockSpec((tr, _LANES), lambda i: (i, 0)),
        compiler_params=pltpu.CompilerParams(
            dimension_semantics=("parallel",),
            vmem_limit_bytes=32 * 1024 * 1024,
        ),
        cost_estimate=cost,
    )(x2d, sel)


@partial(jax.jit, static_argnames=("min_pallas_elems",))
def mod(z: jax.Array, *, min_pallas_elems: int = _MIN_PALLAS_ELEMS) -> jax.Array:
    """Mod(z) = |z|: complex input -> real magnitude (same shape, float32)."""
    if not jnp.issubdtype(z.dtype, jnp.complexfloating):
        return jnp.abs(z)                       # real input: trivial XLA op
    orig_shape = z.shape
    total = z.size
    if total == 0:
        return jnp.zeros(orig_shape, jnp.float32)
    if total < min_pallas_elems:
        # Launch + relayout overhead dominates below a few hundred KiB.
        return jnp.abs(z).astype(jnp.float32)
    if z.dtype != jnp.complex64:
        z = z.astype(jnp.complex64)

    xf = _interleaved_f32(z)                    # (2*total,) f32, interleaved

    if total % _LANES == 0:
        # Common fast path: no pad, no output slice, purely free reshapes.
        rows = total // _LANES
        out = _mod_2d(xf.reshape(rows, _ROW_FLOATS), rows)
        return out.reshape(orig_shape)

    # Rare ragged path: pad only up to the next 256-float row (the (8,128)
    # divisibility rule applies to block_shape, which is already satisfied).
    padded = _round_up(xf.size, _ROW_FLOATS)
    xf = jnp.pad(xf, (0, padded - xf.size))
    rows = padded // _ROW_FLOATS
    out = _mod_2d(xf.reshape(rows, _ROW_FLOATS), rows)
    return out.reshape(-1)[:total].reshape(orig_shape)


if __name__ == "__main__":
    key = jax.random.PRNGKey(0)
    k1, k2, k3, k4 = jax.random.split(key, 4)

    # Spec-sized input: NCHW complex64, matching the PyTorch module's usage.
    shape = (2, 4, 16, 16)
    z = jax.random.normal(k1, shape, jnp.float32) + 1j * jax.random.normal(k2, shape, jnp.float32)
    z = z.astype(jnp.complex64)

    # Force the Pallas path even at this small size (default would bypass it).
    y = mod(z, min_pallas_elems=0)
    jax.block_until_ready(y)
    ref = jnp.abs(z)
    assert y.shape == shape and y.dtype == jnp.float32
    assert float(jnp.max(jnp.abs(y - ref))) < 5e-5

    # Element count not a multiple of 128: exercises the (rare) pad path,
    # a 2-step grid and the masked ragged tail block.
    shape2 = (2, 4, 25, 45)
    z2 = jax.random.normal(k3, shape2, jnp.float32) + 1j * jax.random.normal(k4, shape2, jnp.float32)
    z2 = z2.astype(jnp.complex64)
    y2 = mod(z2, min_pallas_elems=0)
    jax.block_until_ready(y2)
    assert y2.shape == shape2 and y2.dtype == jnp.float32
    assert float(jnp.max(jnp.abs(y2 - jnp.abs(z2)))) < 5e-5

    # Default path: small inputs bypass Pallas and use XLA's fused abs.
    y3 = mod(z)
    jax.block_until_ready(y3)
    assert float(jnp.max(jnp.abs(y3 - ref))) < 1e-6

    print("KERNEL_OK")
</pallas_src>

<mosaic_0001>
module attributes {stable_mosaic.version = 11 : i64} {
  func.func @_mod_kernel(%arg0: i32, %arg1: memref<8x256xf32, #tpu.memory_space<vmem>>, %arg2: memref<256x128xbf16, #tpu.memory_space<vmem>>, %arg3: memref<8x128xf32, #tpu.memory_space<vmem>>) attributes {dimension_semantics = [#tpu.dimension_semantics<parallel>], iteration_bounds = array<i64: 2>, scalar_prefetch = 0 : i64, scratch_operands = 0 : i64, tpu.core_type = #tpu.core_type<tc>, window_params = [{transform_indices = @transform_0, window_bounds = array<i64: 8, 256>}, {pipeline_mode = #tpu.pipeline_mode<synchronous>, transform_indices = @transform_1, window_bounds = array<i64: 256, 128>}, {transform_indices = @transform_2, window_bounds = array<i64: 8, 128>}]} {
    %c0 = arith.constant 0 : index
    %c0_0 = arith.constant 0 : index
    %0 = vector.load %arg1[%c0, %c0_0] : memref<8x256xf32, #tpu.memory_space<vmem>>, vector<8x256xf32>
    %1 = arith.mulf %0, %0 : vector<8x256xf32>
    %cst = arith.constant 3.000000e+38 : f32
    %2 = vector.broadcast %cst : f32 to vector<8x256xf32>
    %3 = arith.cmpf ole, %1, %2 : vector<8x256xf32>
    %cst_1 = arith.constant 3.000000e+38 : f32
    %4 = vector.broadcast %cst_1 : f32 to vector<8x256xf32>
    %5 = arith.select %3, %1, %4 : vector<8x256xi1>, vector<8x256xf32>
    %6 = arith.truncf %5 : vector<8x256xf32> to vector<8x256xbf16>
    %7 = arith.extf %6 : vector<8x256xbf16> to vector<8x256xf32>
    %8 = arith.subf %5, %7 : vector<8x256xf32>
    %9 = arith.truncf %8 : vector<8x256xf32> to vector<8x256xbf16>
    %c0_2 = arith.constant 0 : index
    %c0_3 = arith.constant 0 : index
    %10 = vector.load %arg2[%c0_2, %c0_3] : memref<256x128xbf16, #tpu.memory_space<vmem>>, vector<256x128xbf16>
    %cst_4 = arith.constant dense<0.000000e+00> : vector<8x128xf32>
    %11 = tpu.matmul %6, %10, %cst_4 {dimension_numbers = #tpu.dot_dimension_numbers<[1], [0], [0], [1], [0, 0, 1, 1], [], []>} : vector<8x256xbf16>, vector<256x128xbf16>, vector<8x128xf32> -> vector<8x128xf32>
    %cst_5 = arith.constant dense<0.000000e+00> : vector<8x128xf32>
    %12 = tpu.matmul %9, %10, %cst_5 {dimension_numbers = #tpu.dot_dimension_numbers<[1], [0], [0], [1], [0, 0, 1, 1], [], []>} : vector<8x256xbf16>, vector<256x128xbf16>, vector<8x128xf32> -> vector<8x128xf32>
    %13 = arith.addf %11, %12 : vector<8x128xf32>
    %14 = math.sqrt %13 : vector<8x128xf32>
    %c0_6 = arith.constant 0 : index
    %c0_7 = arith.constant 0 : index
    %15 = vector.load %arg3[%c0_6, %c0_7] : memref<8x128xf32, #tpu.memory_space<vmem>>, vector<8x128xf32>
    tpu.vector_store %arg3[%c0_6, %c0_7], %14 {strides = array<i32>} : memref<8x128xf32, #tpu.memory_space<vmem>>, vector<8x128xf32>,
    return
  }
  func.func @transform_0(%arg0: i32) -> (i32, i32) {
    %c0_i32 = arith.constant 0 : i32
    %c0_i32_0 = arith.constant 0 : i32
    return %arg0, %c0_i32 : i32, i32
  }
  func.func @transform_1(%arg0: i32) -> (i32, i32) {
    %c0_i32 = arith.constant 0 : i32
    %c0_i32_0 = arith.constant 0 : i32
    %c0_i32_1 = arith.constant 0 : i32
    return %c0_i32, %c0_i32_0 : i32, i32
  }
  func.func @transform_2(%arg0: i32) -> (i32, i32) {
    %c0_i32 = arith.constant 0 : i32
    %c0_i32_0 = arith.constant 0 : i32
    return %arg0, %c0_i32 : i32, i32
  }
}

</mosaic_0001>

<llo_original>
// kernel: custom-call.1
$region0: #{custom-call.1}
  %s0 = inlined_call_operand.hbm [shape: c64[2,4,16,16], index: 0, kind: input, shape index: {}]
  %s1 = inlined_call_operand.vmem [shape: f32[2,4,16,16], index: 1, kind: output, shape index: {}]
  %s2 = scalar_lea.hbm %s0, 2048
  $region1: #{custom-call.1} parent=0
    #allocation0 [shape = 's32[1]{0}', space=sflag, size = 0x4, scoped, tag = 'scoped memory for custom-call.1']
    %3 = vsyncpa [#allocation0], 0
    %s4 = sshll.u32 %s1, 4
    %s5 = int_to_ptr.vmem [resolvable:$true] %s4
    %7 = dma.hbm_to_vmem [thread:$0]  %s2, 2048, %s5, [#allocation0]
    %8 = dma.done [#allocation0], 2048
    %9 = vsyncpa [#allocation0], 1

// kernel: custom-call
$region0: #{custom-call}
  %s0 = inlined_call_operand.hbm [shape: c64[2,4,16,16], index: 0, kind: input, shape index: {}]
  %s1 = inlined_call_operand.vmem [shape: f32[2,4,16,16], index: 1, kind: output, shape index: {}]
  $region1: #{custom-call} parent=0
    #allocation0 [shape = 's32[1]{0}', space=sflag, size = 0x4, scoped, tag = 'scoped memory for custom-call']
    %2 = vsyncpa [#allocation0], 0
    %s3 = sshll.u32 %s1, 4
    %s4 = int_to_ptr.vmem [resolvable:$true] %s3
    %6 = dma.hbm_to_vmem [thread:$0]  %s0, 2048, %s4, [#allocation0]
    %7 = dma.done [#allocation0], 2048
    %8 = vsyncpa [#allocation0], 1

// kernel: mod.1
$region0: #{mod.1}
  #allocation0 [shape = 'u32[]', space=smem, size = 0x4, offset = 0x4, fixed_abs, tag = 'smem constant byte address 0x4 - core index']
  #allocation1 [shape = 'u32[144,128]{1,0:T(1,128)}', space=vmem, size = 0x12000, scoped, tag = 'internal scratch']
  %s0 = inlined_call_operand.vmem [shape: f32[16,256], index: 0, kind: input, shape index: {}]
  %s1 = inlined_call_operand.vmem [shape: bf16[256,128], index: 1, kind: input, shape index: {}]
  %s2 = inlined_call_operand.vmem [shape: f32[16,128], index: 2, kind: output, shape index: {}]
  %s3 = sld [smem:[#allocation0]]
  $region41: #{mod.1} parent=0
    _
  %s5 = ssub.s32 1, %s3
  %s6 = scalar_select 0, %s5, %s3
  loop: start=0, step=1, limit=4
  $region2: #{mod.1} parent=0 // loop_pre_header
    _
  $region3: #{mod.1} parent=0 // loop_header
    %s8 = sphi 0, %s12
    %p9 = scmp.ge.s32.totalorder %s8, 4
    %s18 = sphi 0, %s20
    %s21 = sphi 0, %s18
    %s22 = sphi 0, %s21
    %s38 = sphi 0, %s22
    %s42 = sphi 0, %s42
    %s44 = sphi 0, %s42
    %s45 = sphi 0, %s44
    %s59 = sphi 0, %s45
    %s65 = sphi 0, %s67
    %s68 = sphi 0, %s65
    %s69 = sphi 0, %s68
    %s85 = sphi 0, %s69
  $region4: #{mod.1} parent=0 // loop_header_branch
    %11 = sbr.rel (%p9) target = $region8
  $region5: #{mod.1} parent=0 // loop_body
    %s13 = ssub.s32 %s8, 1
    %s14 = ssub.s32 %s8, 2
    %s15 = sadd.s32 %s8, 1
    %s16 = ssub.s32 %s8, %s15
    %p17 = scmp.eq.s32.totalorder %s16, 0
    %s19 = sadd.s32 %s18, 1
    %s20 = scalar_select %p17, %s18, %s19
    %p23 = pneg %p17
    %p24 = scmp.eq.s32.totalorder %s8, 1
    %p25 = por %p23, %p24
    %p26 = scmp.ne.s32.totalorder %s18, %s21
    %p27 = scmp.eq.s32.totalorder %s8, 0
    %p28 = por %p26, %p27
    %p29 = scmp.ne.s32.totalorder %s18, %s21
    %p30 = scmp.eq.s32.totalorder %s13, 1
    %p31 = por %p29, %p30
    %p32 = scmp.ne.s32.totalorder %s21, %s22
    %p33 = scmp.eq.s32.totalorder %s13, 0
    %p34 = por %p32, %p33
    %p35 = scmp.ne.s32.totalorder %s21, %s22
    %p36 = scmp.eq.s32.totalorder %s14, 1
    %p37 = por %p35, %p36
    %p39 = scmp.ne.s32.totalorder %s22, %s38
    %p40 = scmp.eq.s32.totalorder %s14, 0
    %p41 = por %p39, %p40
    %s43 = sadd.s32 %s42, 1
    %p46 = scmp.eq.s32.totalorder %s8, 1
    %p47 = scmp.ne.s32.totalorder %s42, %s44
    %p48 = scmp.eq.s32.totalorder %s8, 0
    %p49 = por %p47, %p48
    %p50 = scmp.ne.s32.totalorder %s42, %s44
    %p51 = scmp.eq.s32.totalorder %s13, 1
    %p52 = por %p50, %p51
    %p53 = scmp.ne.s32.totalorder %s44, %s45
    %p54 = scmp.eq.s32.totalorder %s13, 0
    %p55 = por %p53, %p54
    %p56 = scmp.ne.s32.totalorder %s44, %s45
    %p57 = scmp.eq.s32.totalorder %s14, 1
    %p58 = por %p56, %p57
    %p60 = scmp.ne.s32.totalorder %s45, %s59
    %p61 = scmp.eq.s32.totalorder %s14, 0
    %p62 = por %p60, %p61
    %s63 = ssub.s32 %s8, %s15
    %p64 = scmp.eq.s32.totalorder %s63, 0
    %s66 = sadd.s32 %s65, 1
    %s67 = scalar_select %p64, %s65, %s66
    %p70 = pneg %p64
    %p71 = scmp.eq.s32.totalorder %s8, 1
    %p72 = por %p70, %p71
    %p73 = scmp.ne.s32.totalorder %s65, %s68
    %p74 = scmp.eq.s32.totalorder %s8, 0
    %p75 = por %p73, %p74
    %p76 = scmp.ne.s32.totalorder %s65, %s68
    %p77 = scmp.eq.s32.totalorder %s13, 1
    %p78 = por %p76, %p77
    %p79 = scmp.ne.s32.totalorder %s68, %s69
    %p80 = scmp.eq.s32.totalorder %s13, 0
    %p81 = por %p79, %p80
    %p82 = scmp.ne.s32.totalorder %s68, %s69
    %p83 = scmp.eq.s32.totalorder %s14, 1
    %p84 = por %p82, %p83
    %p86 = scmp.ne.s32.totalorder %s69, %s85
    %p87 = scmp.eq.s32.totalorder %s14, 0
    %p88 = por %p86, %p87
    %p89 = scmp.le.s32.totalorder 1, %s8
    %p90 = scmp.lt.s32.totalorder %s8, 3
    %p91 = pnand %p89, %p90
    %p92 = pneg %p91
    // Predicated region
    $region9: #{mod.1} parent=5 // pred_check
      _
    $region10: #{mod.1} parent=5 // pred_check_branch
      %94 = sbr.rel (%p91) target = $region12
    $region11: #{mod.1} parent=5 // pred_region
      %s95 = ssub.s32 %s8, 1
      // Predicated region
      $region13: #{mod.1} parent=11 // pred_check
        %p96 = pneg %p55
      $region14: #{mod.1} parent=11 // pred_check_branch
        %98 = sbr.rel (%p96) target = $region16
      $region15: #{mod.1} parent=11 // pred_region
        _
      $region16: #{mod.1} parent=11 // pred_fallthru
        _
    $region12: #{mod.1} parent=5 // pred_fallthru
      _
    %p99 = scmp.lt.s32.totalorder %s8, 2
    // Predicated region
    $region17: #{mod.1} parent=5 // pred_check
      %p100 = pneg %p99
    $region18: #{mod.1} parent=5 // pred_check_branch
      %102 = sbr.rel (%p100) target = $region20
    $region19: #{mod.1} parent=5 // pred_region
      // Predicated region
      $region21: #{mod.1} parent=19 // pred_check
        %p103 = pneg %p28
      $region22: #{mod.1} parent=19 // pred_check_branch
        %105 = sbr.rel (%p103) target = $region24
      $region23: #{mod.1} parent=19 // pred_region
        %p106 = scmp.lt.s32.totalorder %s8, 1
        %s107 = scalar_select %p106, %s8, 1
        %s108 = smul.addr %s107, 2
        %s109 = smul.addr %s108, 8
        %s110 = scalar_lea.vmem %s0, %s109
      $region24: #{mod.1} parent=19 // pred_fallthru
        _
    $region20: #{mod.1} parent=5 // pred_fallthru
      _
    %p111 = scmp.le.s32.totalorder 1, %s8
    %p112 = scmp.lt.s32.totalorder %s8, 3
    %p113 = pnand %p111, %p112
    %p114 = pneg %p113
    // Predicated region
    $region25: #{mod.1} parent=5 // pred_check
      _
    $region26: #{mod.1} parent=5 // pred_check_branch
      %116 = sbr.rel (%p113) target = $region28
    $region27: #{mod.1} parent=5 // pred_region
      %s117 = ssub.s32 %s8, 1
      %p118 = scmp.lt.s32.totalorder %s13, 1
      %s119 = scalar_select %p118, %s13, 1
      %s120 = smul.addr %s119, 2
      %s121 = smul.addr %s120, 8
      %s122 = scalar_lea.vmem %s0, %s121
      %p123 = pneg %p34
      %p124 = pneg %p31
      %p125 = pneg %p55
      %p126 = pneg %p52
      %p127 = pneg %p81
      %p128 = pneg %p78
      %p129 = scmp.lt.s32.totalorder %s13, 1
      %s130 = scalar_select %p129, %s13, 1
      %s131 = smul.addr %s130, 8
      %s132 = scalar_lea.vmem %s2, %s131
      %p133 = scmp.lt.s32.totalorder %s13, 1
      %s134 = scalar_select %p133, %s13, 1
      %s135 = smul.addr %s134, 2
      %s136 = smul.addr %s135, 8
      %s137 = scalar_lea.vmem %s0, %s136
      %p138 = scmp.lt.s32.totalorder %s13, 1
      %s139 = scalar_select %p138, %s13, 1
      %s140 = smul.addr %s139, 8
      %s141 = scalar_lea.vmem %s2, %s140
      %v143 = vld [vmem:[%s137] sm:$0xff]
      %v144 = vld [vmem:[%s137 + $0x8] sm:$0xff]
      %v145 = vmul.f32 %v143, %v143
      %v146 = vmul.f32 %v144, %v144
      %vm147 = vcmp.le.f32.partialorder %v145, 3e+38
      %vm148 = vcmp.le.f32.partialorder %v146, 3e+38
      %v149 = vsel %vm147, %v145, 3e+38
      %v150 = vsel %vm148, %v146, 3e+38
      %v151 = vpack.c.bf16 %v149, %v149
      %v152 = vpack.c.bf16 %v150, %v150
      %v153 = vunpack.c.l.bf16 %v151
      %v154 = vunpack.c.l.bf16 %v152
      %v155 = vsub.f32 %v149, %v153
      %v156 = vsub.f32 %v150, %v154
      %v157 = vpack.c.bf16 %v155, %v155
      %v158 = vpack.c.bf16 %v156, %v156
      %v159 = vld [vmem:[%s1] sm:$0xf]
      %v160 = vld [vmem:[%s1 + $0x4] sm:$0xf]
      %v161 = vld [vmem:[%s1 + $0x8] sm:$0xf]
      %v162 = vld [vmem:[%s1 + $0xc] sm:$0xf]
      %v163 = vld [vmem:[%s1 + $0x10] sm:$0xf]
      %v164 = vld [vmem:[%s1 + $0x14] sm:$0xf]
      %v165 = vld [vmem:[%s1 + $0x18] sm:$0xf]
      %v166 = vld [vmem:[%s1 + $0x1c] sm:$0xf]
      %v167 = vld [vmem:[%s1 + $0x20] sm:$0xf]
      %v168 = vld [vmem:[%s1 + $0x24] sm:$0xf]
      %v169 = vld [vmem:[%s1 + $0x28] sm:$0xf]
      %v170 = vld [vmem:[%s1 + $0x2c] sm:$0xf]
      %v171 = vld [vmem:[%s1 + $0x30] sm:$0xf]
      %v172 = vld [vmem:[%s1 + $0x34] sm:$0xf]
      %v173 = vld [vmem:[%s1 + $0x38] sm:$0xf]
      %v174 = vld [vmem:[%s1 + $0x3c] sm:$0xf]
      %v175 = vld [vmem:[%s1 + $0x40] sm:$0xf]
      %v176 = vld [vmem:[%s1 + $0x44] sm:$0xf]
      %v177 = vld [vmem:[%s1 + $0x48] sm:$0xf]
      %v178 = vld [vmem:[%s1 + $0x4c] sm:$0xf]
      %v179 = vld [vmem:[%s1 + $0x50] sm:$0xf]
      %v180 = vld [vmem:[%s1 + $0x54] sm:$0xf]
      %v181 = vld [vmem:[%s1 + $0x58] sm:$0xf]
      %v182 = vld [vmem:[%s1 + $0x5c] sm:$0xf]
      %v183 = vld [vmem:[%s1 + $0x60] sm:$0xf]
      %v184 = vld [vmem:[%s1 + $0x64] sm:$0xf]
      %v185 = vld [vmem:[%s1 + $0x68] sm:$0xf]
      %v186 = vld [vmem:[%s1 + $0x6c] sm:$0xf]
      %v187 = vld [vmem:[%s1 + $0x70] sm:$0xf]
      %v188 = vld [vmem:[%s1 + $0x74] sm:$0xf]
      %v189 = vld [vmem:[%s1 + $0x78] sm:$0xf]
      %v190 = vld [vmem:[%s1 + $0x7c] sm:$0xf]
      %v223 = vunpack.c.l.b16 %v159
      %v224 = vunpack.c.l.b16 %v160
      %v225 = vunpack.c.l.b16 %v161
      %v226 = vunpack.c.l.b16 %v162
      %v227 = vunpack.c.l.b16 %v163
      %v228 = vunpack.c.l.b16 %v164
      %v229 = vunpack.c.l.b16 %v165
      %v230 = vunpack.c.l.b16 %v166
      %v231 = vunpack.c.l.b16 %v167
      %v232 = vunpack.c.l.b16 %v168
      %v233 = vunpack.c.l.b16 %v169
      %v234 = vunpack.c.l.b16 %v170
      %v235 = vunpack.c.l.b16 %v171
      %v236 = vunpack.c.l.b16 %v172
      %v237 = vunpack.c.l.b16 %v173
      %v238 = vunpack.c.l.b16 %v174
      %v239 = vunpack.c.l.b16 %v175
      %v240 = vunpack.c.l.b16 %v176
      %v241 = vunpack.c.l.b16 %v177
      %v242 = vunpack.c.l.b16 %v178
      %v243 = vunpack.c.l.b16 %v179
      %v244 = vunpack.c.l.b16 %v180
      %v245 = vunpack.c.l.b16 %v181
      %v246 = vunpack.c.l.b16 %v182
      %v247 = vunpack.c.l.b16 %v183
      %v248 = vunpack.c.l.b16 %v184
      %v249 = vunpack.c.l.b16 %v185
      %v250 = vunpack.c.l.b16 %v186
      %v251 = vunpack.c.l.b16 %v187
      %v252 = vunpack.c.l.b16 %v188
      %v253 = vunpack.c.l.b16 %v189
      %v254 = vunpack.c.l.b16 %v190
      %v255 = vpack.c.b16 %v224, %v223
      %v256 = vpack.c.b16 %v226, %v225
      %v257 = vpack.c.b16 %v228, %v227
      %v258 = vpack.c.b16 %v230, %v229
      %v259 = vpack.c.b16 %v232, %v231
      %v260 = vpack.c.b16 %v234, %v233
      %v261 = vpack.c.b16 %v236, %v235
      %v262 = vpack.c.b16 %v238, %v237
      %v263 = vpack.c.b16 %v240, %v239
      %v264 = vpack.c.b16 %v242, %v241
      %v265 = vpack.c.b16 %v244, %v243
      %v266 = vpack.c.b16 %v246, %v245
      %v267 = vpack.c.b16 %v248, %v247
      %v268 = vpack.c.b16 %v250, %v249
      %v269 = vpack.c.b16 %v252, %v251
      %v270 = vpack.c.b16 %v254, %v253
      %287 = vmatprep.subr.bf16.mxu0 0
      %288 = vmatpush1.bf16.msra.mxu0 %v255
      %289 = vmatprep.subr.bf16.mxu0 0
      %290 = vmatpush1.bf16.msra.mxu0 %v256
      %291 = vmatprep.subr.bf16.mxu0 0
      %292 = vmatpush1.bf16.msra.mxu0 %v257
      %293 = vmatprep.subr.bf16.mxu0 0
      %294 = vmatpush1.bf16.msra.mxu0 %v258
      %295 = vmatprep.subr.bf16.mxu0 0
      %296 = vmatpush1.bf16.msra.mxu0 %v259
      %297 = vmatprep.subr.bf16.mxu0 0
      %298 = vmatpush1.bf16.msra.mxu0 %v260
      %299 = vmatprep.subr.bf16.mxu0 0
      %300 = vmatpush1.bf16.msra.mxu0 %v261
      %301 = vmatprep.subr.bf16.mxu0 0
      %302 = vmatpush1.bf16.msra.mxu0 %v262
      %303 = vmatprep.subr.bf16.mxu0 0
      %304 = vmatpush1.bf16.msra.mxu0 %v263
      %305 = vmatprep.subr.bf16.mxu0 0
      %306 = vmatpush1.bf16.msra.mxu0 %v264
      %307 = vmatprep.subr.bf16.mxu0 0
      %308 = vmatpush1.bf16.msra.mxu0 %v265
      %309 = vmatprep.subr.bf16.mxu0 0
      %310 = vmatpush1.bf16.msra.mxu0 %v266
      %311 = vmatprep.subr.bf16.mxu0 0
      %312 = vmatpush1.bf16.msra.mxu0 %v267
      %313 = vmatprep.subr.bf16.mxu0 0
      %314 = vmatpush1.bf16.msra.mxu0 %v268
      %315 = vmatprep.subr.bf16.mxu0 0
      %316 = vmatpush1.bf16.msra.mxu0 %v269
      %317 = vmatprep.subr.bf16.mxu0 0
      %318 = vmatpush1.bf16.msra.mxu0 %v270
      %319 = vmatprep.mubr.bf16.mxu0 %v158
      %320 = vmatmul.mubr.bf16.gmra.mrb[0].mxu0 %v157
      %v321 = vpop.f32.mrb[0].mxu0
      %v322 = vadd.f32 0.0, %v321
      %v323 = vpop.f32.mrb[0].mxu0
      %v324 = vpop.f32.mrb[0].mxu0
      %v325 = vpop.f32.mrb[0].mxu0
      %326 = vdwg.mxu0
      %327 = vmatprep.subr.bf16.mxu0 0
      %328 = vmatpush1.bf16.msra.mxu0 %v255
      %329 = vmatprep.subr.bf16.mxu0 0
      %330 = vmatpush1.bf16.msra.mxu0 %v256
      %331 = vmatprep.subr.bf16.mxu0 0
      %332 = vmatpush1.bf16.msra.mxu0 %v257
      %333 = vmatprep.subr.bf16.mxu0 0
      %334 = vmatpush1.bf16.msra.mxu0 %v258
      %335 = vmatprep.subr.bf16.mxu0 0
      %336 = vmatpush1.bf16.msra.mxu0 %v259
      %337 = vmatprep.subr.bf16.mxu0 0
      %338 = vmatpush1.bf16.msra.mxu0 %v260
      %339 = vmatprep.subr.bf16.mxu0 0
      %340 = vmatpush1.bf16.msra.mxu0 %v261
      %341 = vmatprep.subr.bf16.mxu0 0
      %342 = vmatpush1.bf16.msra.mxu0 %v262
      %343 = vmatprep.subr.bf16.mxu0 0
      %344 = vmatpush1.bf16.msra.mxu0 %v263
      %345 = vmatprep.subr.bf16.mxu0 0
      %346 = vmatpush1.bf16.msra.mxu0 %v264
      %347 = vmatprep.subr.bf16.mxu0 0
      %348 = vmatpush1.bf16.msra.mxu0 %v265
      %349 = vmatprep.subr.bf16.mxu0 0
      %350 = vmatpush1.bf16.msra.mxu0 %v266
      %351 = vmatprep.subr.bf16.mxu0 0
      %352 = vmatpush1.bf16.msra.mxu0 %v267
      %353 = vmatprep.subr.bf16.mxu0 0
      %354 = vmatpush1.bf16.msra.mxu0 %v268
      %355 = vmatprep.subr.bf16.mxu0 0
      %356 = vmatpush1.bf16.msra.mxu0 %v269
      %357 = vmatprep.subr.bf16.mxu0 0
      %358 = vmatpush1.bf16.msra.mxu0 %v270
      %359 = vmatprep.mubr.bf16.mxu0 %v152
      %360 = vmatmul.mubr.bf16.gmra.mrb[0].mxu0 %v151
      %v361 = vpop.f32.mrb[0].mxu0
      %v362 = vadd.f32 %v322, %v361
      %v363 = vpop.f32.mrb[0].mxu0
      %v364 = vpop.f32.mrb[0].mxu0
      %v365 = vpop.f32.mrb[0].mxu0
      %366 = vdwg.mxu0
      %v367 = vrsqrt.pop %v362
      %v368 = vmul.f32 %v362, %v367
      %vm369 = vcmp.eq.f32.partialorder %v362, inf
      %v370 = vsel %vm369, %v362, %v368
      %vm371 = vcmp.eq.f32.partialorder %v362, 0.0
      %v372 = vand.u32 %v362, 2147483648
      %v373 = vsel %vm371, %v372, %v370
      %374 = vst [vmem:[%s141] sm:$0xff] %v373
      %p375 = scmp.lt.s32.totalorder %s13, 1
      %s376 = scalar_select %p375, %s13, 1
      %s377 = smul.addr %s376, 8
      %s378 = scalar_lea.vmem %s2, %s377
      // Predicated region
      $region29: #{mod.1} parent=27 // pred_check
        %p379 = pneg %p78
      $region30: #{mod.1} parent=27 // pred_check_branch
        %381 = sbr.rel (%p379) target = $region32
      $region31: #{mod.1} parent=27 // pred_region
        _
      $region32: #{mod.1} parent=27 // pred_fallthru
        _
    $region28: #{mod.1} parent=5 // pred_fallthru
      _
    %p382 = scmp.le.s32.totalorder 2, %s8
    // Predicated region
    $region33: #{mod.1} parent=5 // pred_check
      %p383 = pneg %p382
    $region34: #{mod.1} parent=5 // pred_check_branch
      %385 = sbr.rel (%p383) target = $region36
    $region35: #{mod.1} parent=5 // pred_region
      %s386 = ssub.s32 %s8, 2
      // Predicated region
      $region37: #{mod.1} parent=35 // pred_check
        %p387 = pneg %p84
      $region38: #{mod.1} parent=35 // pred_check_branch
        %389 = sbr.rel (%p387) target = $region40
      $region39: #{mod.1} parent=35 // pred_region
        %p390 = scmp.lt.s32.totalorder %s14, 1
        %s391 = scalar_select %p390, %s14, 1
        %s392 = smul.addr %s391, 8
        %s393 = scalar_lea.vmem %s2, %s392
      $region40: #{mod.1} parent=35 // pred_fallthru
        _
    $region36: #{mod.1} parent=5 // pred_fallthru
      _
  $region6: #{mod.1} parent=0 // loop_footer
    %s12 = sadd.s32 1, %s8
  $region7: #{mod.1} parent=0 // loop_footer_branch
    %7 = sbr.rel target = $region3
  $region8: #{mod.1} parent=0 // loop_exit
    _

</llo_original>
